<compile_context>
chip_gen: v7x
topology: tpu7x:2x2x1
jax: 0.10.0
libtpu: 0.0.40
codegen_flags: <defaults>
</compile_context>

<pallas_src>
import collections
import functools

import jax
import jax.numpy as jnp
from jax.experimental import pallas as pl
from jax.experimental.pallas import tpu as pltpu

_LANE = 128
_SUBLANE = 8

EncoderParams = collections.namedtuple("EncoderParams", ["layers", "head_w", "head_b"])


def _round_up(n, m):
    return ((n + m - 1) // m) * m


def _pad2d(a, rows, cols):
    return jnp.pad(a, ((0, rows - a.shape[0]), (0, cols - a.shape[1])))


def _tensorcores_per_chip():
    """Best-effort TensorCore-per-chip count (fail-safe: 1)."""
    try:
        kind = jax.devices()[0].device_kind.lower()
    except Exception:
        return 1
    # v4 / v5p megacore and v7x have 2 TensorCores per chip; v5e/v6e have 1.
    for tag in ("v4", "v5p", "v7", "tpu7"):
        if tag in kind:
            return 2
    return 1


def _choose_tile_m(batch, n_cores):
    """Batch tile: one step on single-TC chips; even per-core split on multi-TC."""
    b = _round_up(batch, _SUBLANE)
    if n_cores <= 1:
        # Single TensorCore (v5e/v6e): avoid per-step pipeline overhead.
        return min(b, 512)
    # Multi-TC (v7x): split the padded batch evenly across cores.
    per_core = _round_up(pl.cdiv(b, n_cores), _SUBLANE)
    return min(per_core, 512)


def _make_encoder_kernel(n_hidden: int):
    """Kernel: n_hidden (Linear+ReLU) layers + fused packed [mu|logvar] head."""

    def kernel(*refs):
        # refs layout:
        #   [x,
        #    W1, b1, ..., Wn, bn,          (n_hidden Linear+ReLU layers)
        #    W_heads, b_heads,             (packed [mu | logvar] head)
        #    ml_out, std_out]
        x_ref = refs[0]
        w_refs = refs[1:1 + 2 * n_hidden]
        wh_ref = refs[1 + 2 * n_hidden]
        bh_ref = refs[2 + 2 * n_hidden]
        ml_ref, std_ref = refs[3 + 2 * n_hidden:]

        h = x_ref[...]
        for li in range(n_hidden):
            w = w_refs[2 * li][...]
            b = w_refs[2 * li + 1][...]          # (1, out_pad) f32, broadcasts
            h = jnp.dot(h, w, preferred_element_type=jnp.float32) + b
            h = jnp.maximum(h, 0.0)              # ReLU in f32 on the VPU
            h = h.astype(w.dtype)                # back to compute dtype for MXU

        # Single packed head matmul: lanes [0:emb] = mu, [emb:2*emb] = logvar,
        # remaining lanes are zero padding.  No in-kernel lane slicing; the
        # wrapper extracts mu/logvar/std from the two lane-dense outputs.
        heads = jnp.dot(h, wh_ref[...], preferred_element_type=jnp.float32)
        heads = heads + bh_ref[...]

        ml_ref[...] = heads
        std_ref[...] = jnp.exp(0.5 * heads)      # std lanes sliced in wrapper

    return kernel


def init_encoder_params(key, data_dim, compress_dims, embedding_dim):
    """Deterministic parameter init (shapes match torch.nn.Linear, transposed)."""
    params = []
    dim = data_dim
    dims = list(compress_dims)
    keys = jax.random.split(key, len(dims) + 2)
    for i, out_dim in enumerate(dims):
        kw, kb = jax.random.split(keys[i])
        W = jax.random.normal(kw, (dim, out_dim), jnp.float32) * 0.05   # (in, out)
        b = jax.random.normal(kb, (1, out_dim), jnp.float32) * 0.05
        params.append((W, b))
        dim = out_dim
    kmu_w, kmu_b = jax.random.split(keys[-2])
    klv_w, klv_b = jax.random.split(keys[-1])
    Wmu = jax.random.normal(kmu_w, (dim, embedding_dim), jnp.float32) * 0.05
    bmu = jax.random.normal(kmu_b, (1, embedding_dim), jnp.float32) * 0.05
    Wlv = jax.random.normal(klv_w, (dim, embedding_dim), jnp.float32) * 0.05
    blv = jax.random.normal(klv_b, (1, embedding_dim), jnp.float32) * 0.05
    return params, (Wmu, bmu), (Wlv, blv)


def prepare_encoder_params(params, mu_head, lv_head, *, compute_dtype=jnp.bfloat16):
    """One-time layout plumbing, hoisted out of the per-call forward path.

    Pads every feature dim to a multiple of 128 lanes, fuses the mu/logvar heads
    into a single packed (dim, round_up(2*emb,128)) matmul and casts all matmul
    operands to the compute dtype.  Returns (EncoderParams, emb).
    """
    layers = []
    prev_pad = None
    for (W, b) in params:
        in_dim, out_dim = W.shape
        in_pad = _round_up(in_dim, _LANE) if prev_pad is None else prev_pad
        out_pad = _round_up(out_dim, _LANE)
        Wp = _pad2d(W, in_pad, out_pad).astype(compute_dtype)
        bp = _pad2d(b, 1, out_pad).astype(jnp.float32)
        layers.append((Wp, bp))
        prev_pad = out_pad

    (Wmu, bmu), (Wlv, blv) = mu_head, lv_head
    dim, emb = Wmu.shape
    if prev_pad is None:
        prev_pad = _round_up(dim, _LANE)
    head_w = _round_up(2 * emb, _LANE)
    Wh = _pad2d(jnp.concatenate([Wmu, Wlv], axis=1), prev_pad, head_w)
    Wh = Wh.astype(compute_dtype)
    bh = _pad2d(jnp.concatenate([bmu, blv], axis=1), 1, head_w).astype(jnp.float32)

    return EncoderParams(tuple(layers), Wh, bh), emb


@functools.partial(jax.jit, static_argnames=("emb",))
def encoder_forward(x, prep, *, emb):
    """Encoder forward: one Pallas kernel over a batch-tiled 1-D grid."""
    layers = prep.layers
    n_hidden = len(layers)
    Wh, bh = prep.head_w, prep.head_b
    in_pad = layers[0][0].shape[0] if n_hidden else Wh.shape[0]
    head_w = Wh.shape[1]
    compute_dtype = Wh.dtype

    B = x.shape[0]
    tile_m = _choose_tile_m(B, _tensorcores_per_chip())
    Bp = _round_up(B, tile_m)

    # Pad / cast x only when needed (skip no-op copies on aligned shapes).
    x_p = x
    if x.shape != (Bp, in_pad):
        x_p = jnp.pad(x, ((0, Bp - B), (0, in_pad - x.shape[1])))
    if x_p.dtype != compute_dtype:
        x_p = x_p.astype(compute_dtype)

    operands = [x_p]
    in_specs = [pl.BlockSpec((tile_m, in_pad), lambda i: (i, 0))]
    for (Wp, bp) in layers:
        operands += [Wp, bp]
        in_specs += [pl.BlockSpec(Wp.shape, lambda i: (0, 0)),
                     pl.BlockSpec(bp.shape, lambda i: (0, 0))]
    operands += [Wh, bh]
    in_specs += [pl.BlockSpec(Wh.shape, lambda i: (0, 0)),
                 pl.BlockSpec(bh.shape, lambda i: (0, 0))]

    out_spec = pl.BlockSpec((tile_m, head_w), lambda i: (i, 0))
    out_shape = jax.ShapeDtypeStruct((Bp, head_w), jnp.float32)

    # Advisory cost estimate (helps XLA schedule the custom call).
    flops = 0
    prev = in_pad
    for (Wp, _) in layers:
        flops += 2 * Bp * prev * Wp.shape[1]
        prev = Wp.shape[1]
    flops += 2 * Bp * prev * head_w
    weight_bytes = sum(int(a.size) * a.dtype.itemsize for a in operands[1:])
    bytes_accessed = (int(x_p.size) * x_p.dtype.itemsize
                      + weight_bytes
                      + 2 * Bp * head_w * 4)
    cost = pl.CostEstimate(flops=flops,
                           transcendentals=Bp * head_w,
                           bytes_accessed=bytes_accessed)

    # Explicit VMEM budget from the real footprint (weights resident +
    # double-buffered x / output tiles), floored at the default scoped limit
    # and capped below v7x physical VMEM.
    block_bytes = (tile_m * in_pad * x_p.dtype.itemsize
                   + weight_bytes
                   + 2 * tile_m * head_w * 4)
    vmem_limit = int(min(max(4 * block_bytes + (4 << 20), 32 << 20), 64 << 20))

    kernel = _make_encoder_kernel(n_hidden)
    ml, std_full = pl.pallas_call(
        kernel,
        out_shape=(out_shape, out_shape),
        grid_spec=pltpu.PrefetchScalarGridSpec(
            num_scalar_prefetch=0,
            grid=(Bp // tile_m,),
            in_specs=in_specs,
            out_specs=[out_spec, out_spec],
        ),
        compiler_params=pltpu.CompilerParams(
            dimension_semantics=("parallel",),
            vmem_limit_bytes=vmem_limit),
        cost_estimate=cost,
    )(*operands)

    # Slice off batch padding and unpack the lane-packed head.
    mu = ml[:B, :emb]
    logvar = ml[:B, emb:2 * emb]
    std = std_full[:B, emb:2 * emb]
    return mu, std, logvar


def encoder_reference(x, params, mu_head, lv_head):
    """Pure-JAX f32 reference matching the PyTorch forward."""
    h = x
    for (W, b) in params:
        h = jnp.maximum(h @ W + b, 0.0)
    mu = h @ mu_head[0] + mu_head[1]
    logvar = h @ lv_head[0] + lv_head[1]
    std = jnp.exp(0.5 * logvar)
    return mu, std, logvar


if __name__ == "__main__":
    # Small shapes consistent with the module's forward:
    #   data_dim=32, compress_dims=(64, 32), embedding_dim=16, batch=16
    data_dim = 32
    compress_dims = (64, 32)
    embedding_dim = 16
    batch = 16

    key = jax.random.PRNGKey(0)
    kx, kp = jax.random.split(key)
    x = jax.random.normal(kx, (batch, data_dim), jnp.float32)
    params, mu_head, lv_head = init_encoder_params(
        kp, data_dim, compress_dims, embedding_dim)

    # pure-JAX reference
    mu_r, std_r, lv_r = encoder_reference(x, params, mu_head, lv_head)

    # f32 kernel (strict check)
    prep_f32, emb = prepare_encoder_params(
        params, mu_head, lv_head, compute_dtype=jnp.float32)
    mu, std, logvar = encoder_forward(x, prep_f32, emb=emb)
    jax.block_until_ready((mu, std, logvar))
    assert mu.shape == (batch, embedding_dim)
    assert std.shape == (batch, embedding_dim)
    assert logvar.shape == (batch, embedding_dim)
    assert jnp.allclose(mu, mu_r, atol=1e-5), "mu mismatch (f32)"
    assert jnp.allclose(std, std_r, atol=1e-5), "std mismatch (f32)"
    assert jnp.allclose(logvar, lv_r, atol=1e-5), "logvar mismatch (f32)"

    # bf16 operands (default), f32 accumulation — v6e/v7x fast path, looser tol
    prep_bf16, emb = prepare_encoder_params(params, mu_head, lv_head)
    mu_b, std_b, lv_b = encoder_forward(x, prep_bf16, emb=emb)
    jax.block_until_ready((mu_b, std_b, lv_b))
    assert jnp.allclose(mu_b, mu_r, atol=5e-2, rtol=5e-2), "mu mismatch (bf16)"
    assert jnp.allclose(std_b, std_r, atol=5e-2, rtol=5e-2), "std mismatch (bf16)"
    assert jnp.allclose(lv_b, lv_r, atol=5e-2, rtol=5e-2), "logvar mismatch (bf16)"

    print("KERNEL_OK")
</pallas_src>

<mosaic_0001>
module attributes {stable_mosaic.version = 11 : i64} {
  func.func @kernel(%arg0: i32, %arg1: memref<16x128xf32, #tpu.memory_space<vmem>>, %arg2: memref<128x128xf32, #tpu.memory_space<vmem>>, %arg3: memref<1x128xf32, #tpu.memory_space<vmem>>, %arg4: memref<128x128xf32, #tpu.memory_space<vmem>>, %arg5: memref<1x128xf32, #tpu.memory_space<vmem>>, %arg6: memref<128x128xf32, #tpu.memory_space<vmem>>, %arg7: memref<1x128xf32, #tpu.memory_space<vmem>>, %arg8: memref<16x128xf32, #tpu.memory_space<vmem>>, %arg9: memref<16x128xf32, #tpu.memory_space<vmem>>) attributes {dimension_semantics = [#tpu.dimension_semantics<parallel>], iteration_bounds = array<i64: 1>, scalar_prefetch = 0 : i64, scratch_operands = 0 : i64, tpu.core_type = #tpu.core_type<tc>, window_params = [{transform_indices = @transform_0, window_bounds = array<i64: 16, 128>}, {pipeline_mode = #tpu.pipeline_mode<synchronous>, transform_indices = @transform_1, window_bounds = array<i64: 128, 128>}, {pipeline_mode = #tpu.pipeline_mode<synchronous>, transform_indices = @transform_2, window_bounds = array<i64: 1, 128>}, {pipeline_mode = #tpu.pipeline_mode<synchronous>, transform_indices = @transform_3, window_bounds = array<i64: 128, 128>}, {pipeline_mode = #tpu.pipeline_mode<synchronous>, transform_indices = @transform_4, window_bounds = array<i64: 1, 128>}, {pipeline_mode = #tpu.pipeline_mode<synchronous>, transform_indices = @transform_5, window_bounds = array<i64: 128, 128>}, {pipeline_mode = #tpu.pipeline_mode<synchronous>, transform_indices = @transform_6, window_bounds = array<i64: 1, 128>}, {transform_indices = @transform_7, window_bounds = array<i64: 16, 128>}, {transform_indices = @transform_8, window_bounds = array<i64: 16, 128>}]} {
    %c0 = arith.constant 0 : index
    %c0_0 = arith.constant 0 : index
    %0 = vector.load %arg1[%c0, %c0_0] : memref<16x128xf32, #tpu.memory_space<vmem>>, vector<16x128xf32>
    %c0_1 = arith.constant 0 : index
    %c0_2 = arith.constant 0 : index
    %1 = vector.load %arg2[%c0_1, %c0_2] : memref<128x128xf32, #tpu.memory_space<vmem>>, vector<128x128xf32>
    %c0_3 = arith.constant 0 : index
    %c0_4 = arith.constant 0 : index
    %2 = vector.load %arg3[%c0_3, %c0_4] : memref<1x128xf32, #tpu.memory_space<vmem>>, vector<1x128xf32>
    %cst = arith.constant dense<0.000000e+00> : vector<16x128xf32>
    %3 = tpu.matmul %0, %1, %cst {dimension_numbers = #tpu.dot_dimension_numbers<[1], [0], [0], [1], [0, 0, 1, 1], [], []>} : vector<16x128xf32>, vector<128x128xf32>, vector<16x128xf32> -> vector<16x128xf32>
    %4 = vector.broadcast %2 : vector<1x128xf32> to vector<16x128xf32>
    %5 = arith.addf %3, %4 : vector<16x128xf32>
    %cst_5 = arith.constant 0.000000e+00 : f32
    %6 = vector.broadcast %cst_5 : f32 to vector<16x128xf32>
    %7 = arith.maximumf %5, %6 : vector<16x128xf32>
    %c0_6 = arith.constant 0 : index
    %c0_7 = arith.constant 0 : index
    %8 = vector.load %arg4[%c0_6, %c0_7] : memref<128x128xf32, #tpu.memory_space<vmem>>, vector<128x128xf32>
    %c0_8 = arith.constant 0 : index
    %c0_9 = arith.constant 0 : index
    %9 = vector.load %arg5[%c0_8, %c0_9] : memref<1x128xf32, #tpu.memory_space<vmem>>, vector<1x128xf32>
    %cst_10 = arith.constant dense<0.000000e+00> : vector<16x128xf32>
    %10 = tpu.matmul %7, %8, %cst_10 {dimension_numbers = #tpu.dot_dimension_numbers<[1], [0], [0], [1], [0, 0, 1, 1], [], []>} : vector<16x128xf32>, vector<128x128xf32>, vector<16x128xf32> -> vector<16x128xf32>
    %11 = vector.broadcast %9 : vector<1x128xf32> to vector<16x128xf32>
    %12 = arith.addf %10, %11 : vector<16x128xf32>
    %cst_11 = arith.constant 0.000000e+00 : f32
    %13 = vector.broadcast %cst_11 : f32 to vector<16x128xf32>
    %14 = arith.maximumf %12, %13 : vector<16x128xf32>
    %c0_12 = arith.constant 0 : index
    %c0_13 = arith.constant 0 : index
    %15 = vector.load %arg6[%c0_12, %c0_13] : memref<128x128xf32, #tpu.memory_space<vmem>>, vector<128x128xf32>
    %cst_14 = arith.constant dense<0.000000e+00> : vector<16x128xf32>
    %16 = tpu.matmul %14, %15, %cst_14 {dimension_numbers = #tpu.dot_dimension_numbers<[1], [0], [0], [1], [0, 0, 1, 1], [], []>} : vector<16x128xf32>, vector<128x128xf32>, vector<16x128xf32> -> vector<16x128xf32>
    %c0_15 = arith.constant 0 : index
    %c0_16 = arith.constant 0 : index
    %17 = vector.load %arg7[%c0_15, %c0_16] : memref<1x128xf32, #tpu.memory_space<vmem>>, vector<1x128xf32>
    %18 = vector.broadcast %17 : vector<1x128xf32> to vector<16x128xf32>
    %19 = arith.addf %16, %18 : vector<16x128xf32>
    %c0_17 = arith.constant 0 : index
    %c0_18 = arith.constant 0 : index
    %20 = vector.load %arg8[%c0_17, %c0_18] : memref<16x128xf32, #tpu.memory_space<vmem>>, vector<16x128xf32>
    tpu.vector_store %arg8[%c0_17, %c0_18], %19 {strides = array<i32>} : memref<16x128xf32, #tpu.memory_space<vmem>>, vector<16x128xf32>,
    %cst_19 = arith.constant 5.000000e-01 : f32
    %21 = vector.broadcast %cst_19 : f32 to vector<16x128xf32>
    %22 = arith.mulf %21, %19 : vector<16x128xf32>
    %23 = math.exp %22 : vector<16x128xf32>
    %c0_20 = arith.constant 0 : index
    %c0_21 = arith.constant 0 : index
    %24 = vector.load %arg9[%c0_20, %c0_21] : memref<16x128xf32, #tpu.memory_space<vmem>>, vector<16x128xf32>
    tpu.vector_store %arg9[%c0_20, %c0_21], %23 {strides = array<i32>} : memref<16x128xf32, #tpu.memory_space<vmem>>, vector<16x128xf32>,
    return
  }
  func.func @transform_0(%arg0: i32) -> (i32, i32) {
    %c0_i32 = arith.constant 0 : i32
    %c0_i32_0 = arith.constant 0 : i32
    return %arg0, %c0_i32 : i32, i32
  }
  func.func @transform_1(%arg0: i32) -> (i32, i32) {
    %c0_i32 = arith.constant 0 : i32
    %c0_i32_0 = arith.constant 0 : i32
    %c0_i32_1 = arith.constant 0 : i32
    return %c0_i32, %c0_i32_0 : i32, i32
  }
  func.func @transform_2(%arg0: i32) -> (i32, i32) {
    %c0_i32 = arith.constant 0 : i32
    %c0_i32_0 = arith.constant 0 : i32
    %c0_i32_1 = arith.constant 0 : i32
    return %c0_i32, %c0_i32_0 : i32, i32
  }
  func.func @transform_3(%arg0: i32) -> (i32, i32) {
    %c0_i32 = arith.constant 0 : i32
    %c0_i32_0 = arith.constant 0 : i32
    %c0_i32_1 = arith.constant 0 : i32
    return %c0_i32, %c0_i32_0 : i32, i32
  }
  func.func @transform_4(%arg0: i32) -> (i32, i32) {
    %c0_i32 = arith.constant 0 : i32
    %c0_i32_0 = arith.constant 0 : i32
    %c0_i32_1 = arith.constant 0 : i32
    return %c0_i32, %c0_i32_0 : i32, i32
  }
  func.func @transform_5(%arg0: i32) -> (i32, i32) {
    %c0_i32 = arith.constant 0 : i32
    %c0_i32_0 = arith.constant 0 : i32
    %c0_i32_1 = arith.constant 0 : i32
    return %c0_i32, %c0_i32_0 : i32, i32
  }
  func.func @transform_6(%arg0: i32) -> (i32, i32) {
    %c0_i32 = arith.constant 0 : i32
    %c0_i32_0 = arith.constant 0 : i32
    %c0_i32_1 = arith.constant 0 : i32
    return %c0_i32, %c0_i32_0 : i32, i32
  }
  func.func @transform_7(%arg0: i32) -> (i32, i32) {
    %c0_i32 = arith.constant 0 : i32
    %c0_i32_0 = arith.constant 0 : i32
    return %arg0, %c0_i32 : i32, i32
  }
  func.func @transform_8(%arg0: i32) -> (i32, i32) {
    %c0_i32 = arith.constant 0 : i32
    %c0_i32_0 = arith.constant 0 : i32
    return %arg0, %c0_i32 : i32, i32
  }
}

</mosaic_0001>

<llo_original>
// kernel: encoder_forward.1
$region0: #{encoder_forward.1}
  #allocation0 [shape = 'u32[]', space=smem, size = 0x4, offset = 0x4, fixed_abs, tag = 'smem constant byte address 0x4 - core index']
  #allocation1 [shape = 'u32[144,128]{1,0:T(1,128)}', space=vmem, size = 0x12000, scoped, tag = 'internal scratch']
  %s0 = inlined_call_operand.vmem [shape: f32[16,128], index: 0, kind: input, shape index: {}]
  %s1 = inlined_call_operand.hbm [shape: f32[128,128], index: 1, kind: input, shape index: {}]
  %s2 = inlined_call_operand.vmem [shape: f32[1,128], index: 2, kind: input, shape index: {}]
  %s3 = inlined_call_operand.hbm [shape: f32[128,128], index: 3, kind: input, shape index: {}]
  %s4 = inlined_call_operand.vmem [shape: f32[1,128], index: 4, kind: input, shape index: {}]
  %s5 = inlined_call_operand.hbm [shape: f32[128,128], index: 5, kind: input, shape index: {}]
  %s6 = inlined_call_operand.vmem [shape: f32[1,128], index: 6, kind: input, shape index: {}]
  %s7 = inlined_call_operand.vmem [shape: f32[16,128], index: 7, kind: output, shape index: {0}]
  %s8 = inlined_call_operand.vmem [shape: f32[16,128], index: 8, kind: output, shape index: {1}]
  %9 = xla_tuple %s7, %s8
  %s10 = sld [smem:[#allocation0]]
  $region58: #{encoder_forward.1} parent=0
    _
  %s12 = ssub.s32 1, %s10
  %s13 = scalar_select 0, %s12, %s10
  $region1: #{encoder_forward.1} parent=0
    #allocation2 [shape = 'u8[65536]{0}', space=vmem, size = 0x10000, scoped, tag = 'input window, operand 1, single buffered']
    #allocation3 [shape = 's32[1]{0}', space=sflag, size = 0x4, scoped, tag = 'scoped memory for encoder_forward.1']
    #allocation4 [shape = 'u8[65536]{0}', space=vmem, size = 0x10000, scoped, tag = 'input window, operand 3, single buffered']
    #allocation5 [shape = 's32[1]{0}', space=sflag, size = 0x4, scoped, tag = 'scoped memory for encoder_forward.1']
    #allocation6 [shape = 'u8[65536]{0}', space=vmem, size = 0x10000, scoped, tag = 'input window, operand 5, single buffered']
    %14 = vsyncpa [#allocation3], 0
    %15 = vsyncpa [#allocation5], 0
    // Predicated region
    $region2: #{encoder_forward.1} parent=1 // pred_check
      _
    $region3: #{encoder_forward.1} parent=1 // pred_check_branch
      %17 = sbr.rel (0) target = $region5
    $region4: #{encoder_forward.1} parent=1 // pred_region
      _
    $region5: #{encoder_forward.1} parent=1 // pred_fallthru
      _
    // Predicated region
    $region6: #{encoder_forward.1} parent=1 // pred_check
      _
    $region7: #{encoder_forward.1} parent=1 // pred_check_branch
      %19 = sbr.rel (0) target = $region9
    $region8: #{encoder_forward.1} parent=1 // pred_region
      %s21 = ssub.s32 2048, 2048
      %22 = vsyncadd [#allocation3], %s21
      %s23 = sshll.u32 [#allocation2], 4
      %s24 = int_to_ptr.vmem [resolvable:$true] %s23
      %29 = dma.hbm_to_vmem [thread:$0]  %s1, 2048, %s24, [#allocation3], 128, 128, 8
    $region9: #{encoder_forward.1} parent=1 // pred_fallthru
      _
    // Predicated region
    $region10: #{encoder_forward.1} parent=1 // pred_check
      _
    $region11: #{encoder_forward.1} parent=1 // pred_check_branch
      %31 = sbr.rel (0) target = $region13
    $region12: #{encoder_forward.1} parent=1 // pred_region
      _
    $region13: #{encoder_forward.1} parent=1 // pred_fallthru
      _
    // Predicated region
    $region14: #{encoder_forward.1} parent=1 // pred_check
      _
    $region15: #{encoder_forward.1} parent=1 // pred_check_branch
      %33 = sbr.rel (0) target = $region17
    $region16: #{encoder_forward.1} parent=1 // pred_region
      %s35 = ssub.s32 2048, 2048
      %36 = vsyncadd [#allocation5], %s35
      %s37 = sshll.u32 [#allocation4], 4
      %s38 = int_to_ptr.vmem [resolvable:$true] %s37
      %43 = dma.hbm_to_vmem [thread:$0]  %s3, 2048, %s38, [#allocation5], 128, 128, 8
    $region17: #{encoder_forward.1} parent=1 // pred_fallthru
      _
    // Predicated region
    $region18: #{encoder_forward.1} parent=1 // pred_check
      _
    $region19: #{encoder_forward.1} parent=1 // pred_check_branch
      %45 = sbr.rel (0) target = $region21
    $region20: #{encoder_forward.1} parent=1 // pred_region
      _
    $region21: #{encoder_forward.1} parent=1 // pred_fallthru
      _
    // Predicated region
    $region22: #{encoder_forward.1} parent=1 // pred_check
      _
    $region23: #{encoder_forward.1} parent=1 // pred_check_branch
      %47 = sbr.rel (0) target = $region25
    $region24: #{encoder_forward.1} parent=1 // pred_region
      %s49 = ssub.s32 2048, 2048
      %50 = vsyncadd [#allocation5], %s49
      %s51 = sshll.u32 [#allocation6], 4
      %s52 = int_to_ptr.vmem [resolvable:$true] %s51
      %57 = dma.hbm_to_vmem [thread:$0]  %s5, 2048, %s52, [#allocation5], 128, 128, 8
    $region25: #{encoder_forward.1} parent=1 // pred_fallthru
      _
    // Predicated region
    $region26: #{encoder_forward.1} parent=1 // pred_check
      _
    $region27: #{encoder_forward.1} parent=1 // pred_check_branch
      %59 = sbr.rel (0) target = $region29
    $region28: #{encoder_forward.1} parent=1 // pred_region
      _
    $region29: #{encoder_forward.1} parent=1 // pred_fallthru
      _
    // Predicated region
    $region30: #{encoder_forward.1} parent=1 // pred_check
      _
    $region31: #{encoder_forward.1} parent=1 // pred_check_branch
      %61 = sbr.rel (0) target = $region33
    $region32: #{encoder_forward.1} parent=1 // pred_region
      %62 = dma.done [#allocation3], 2048
    $region33: #{encoder_forward.1} parent=1 // pred_fallthru
      _
    // Predicated region
    $region34: #{encoder_forward.1} parent=1 // pred_check
      _
    $region35: #{encoder_forward.1} parent=1 // pred_check_branch
      %64 = sbr.rel (0) target = $region37
    $region36: #{encoder_forward.1} parent=1 // pred_region
      %65 = dma.done [#allocation5], 2048
    $region37: #{encoder_forward.1} parent=1 // pred_fallthru
      _
    // Predicated region
    $region38: #{encoder_forward.1} parent=1 // pred_check
      _
    $region39: #{encoder_forward.1} parent=1 // pred_check_branch
      %67 = sbr.rel (0) target = $region41
    $region40: #{encoder_forward.1} parent=1 // pred_region
      %68 = dma.done [#allocation5], 2048
    $region41: #{encoder_forward.1} parent=1 // pred_fallthru
      _
    %v69 = vld [vmem:[%s0] sm:$0xff]
    %v70 = vld [vmem:[%s0 + $0x8] sm:$0xff]
    %v71 = vld [vmem:[#allocation2] sm:$0xff]
    %v72 = vld [vmem:[#allocation2 + $0x8] sm:$0xff]
    %v73 = vld [vmem:[#allocation2 + $0x10] sm:$0xff]
    %v74 = vld [vmem:[#allocation2 + $0x18] sm:$0xff]
    %v75 = vld [vmem:[#allocation2 + $0x20] sm:$0xff]
    %v76 = vld [vmem:[#allocation2 + $0x28] sm:$0xff]
    %v77 = vld [vmem:[#allocation2 + $0x30] sm:$0xff]
    %v78 = vld [vmem:[#allocation2 + $0x38] sm:$0xff]
    %v79 = vld [vmem:[#allocation2 + $0x40] sm:$0xff]
    %v80 = vld [vmem:[#allocation2 + $0x48] sm:$0xff]
    %v81 = vld [vmem:[#allocation2 + $0x50] sm:$0xff]
    %v82 = vld [vmem:[#allocation2 + $0x58] sm:$0xff]
    %v83 = vld [vmem:[#allocation2 + $0x60] sm:$0xff]
    %v84 = vld [vmem:[#allocation2 + $0x68] sm:$0xff]
    %v85 = vld [vmem:[#allocation2 + $0x70] sm:$0xff]
    %v86 = vld [vmem:[#allocation2 + $0x78] sm:$0xff]
    %v87 = vld [vmem:[%s2] sm:$0x1]
    %v89 = vlaneseq
    %v90 = vshrl.u32 %v89, 7
    %v91 = vsub.s32 0, %v90
    %v92 = vrot.slane %v87, %v91
    %94 = vmatprep.subr.mxu0 0.0
    %95 = vmatpush1.msra.mxu0 %v71
    %96 = vmatprep.subr.mxu0 0.0
    %97 = vmatpush1.msra.mxu0 %v72
    %98 = vmatprep.subr.mxu0 0.0
    %99 = vmatpush1.msra.mxu0 %v73
    %100 = vmatprep.subr.mxu0 0.0
    %101 = vmatpush1.msra.mxu0 %v74
    %102 = vmatprep.subr.mxu0 0.0
    %103 = vmatpush1.msra.mxu0 %v75
    %104 = vmatprep.subr.mxu0 0.0
    %105 = vmatpush1.msra.mxu0 %v76
    %106 = vmatprep.subr.mxu0 0.0
    %107 = vmatpush1.msra.mxu0 %v77
    %108 = vmatprep.subr.mxu0 0.0
    %109 = vmatpush1.msra.mxu0 %v78
    %110 = vmatprep.subr.mxu0 0.0
    %111 = vmatpush1.msra.mxu0 %v79
    %112 = vmatprep.subr.mxu0 0.0
    %113 = vmatpush1.msra.mxu0 %v80
    %114 = vmatprep.subr.mxu0 0.0
    %115 = vmatpush1.msra.mxu0 %v81
    %116 = vmatprep.subr.mxu0 0.0
    %117 = vmatpush1.msra.mxu0 %v82
    %118 = vmatprep.subr.mxu0 0.0
    %119 = vmatpush1.msra.mxu0 %v83
    %120 = vmatprep.subr.mxu0 0.0
    %121 = vmatpush1.msra.mxu0 %v84
    %122 = vmatprep.subr.mxu0 0.0
    %123 = vmatpush1.msra.mxu0 %v85
    %124 = vmatprep.subr.mxu0 0.0
    %125 = vmatpush1.msra.mxu0 %v86
    %126 = vmatprep.subr.mxu0 0.0
    %127 = vmatpush1.msra.mxu0 0.0
    %128 = vmatprep.subr.mxu0 0.0
    %129 = vmatpush1.msra.mxu0 0.0
    %130 = vmatprep.subr.mxu0 0.0
    %131 = vmatpush1.msra.mxu0 0.0
    %132 = vmatprep.subr.mxu0 0.0
    %133 = vmatpush1.msra.mxu0 0.0
    %134 = vmatprep.subr.mxu0 0.0
    %135 = vmatpush1.msra.mxu0 0.0
    %136 = vmatprep.subr.mxu0 0.0
    %137 = vmatpush1.msra.mxu0 0.0
    %138 = vmatprep.subr.mxu0 0.0
    %139 = vmatpush1.msra.mxu0 0.0
    %140 = vmatprep.subr.mxu0 0.0
    %141 = vmatpush1.msra.mxu0 0.0
    %142 = vmatprep.subr.mxu0 0.0
    %143 = vmatpush1.msra.mxu0 0.0
    %144 = vmatprep.subr.mxu0 0.0
    %145 = vmatpush1.msra.mxu0 0.0
    %146 = vmatprep.subr.mxu0 0.0
    %147 = vmatpush1.msra.mxu0 0.0
    %148 = vmatprep.subr.mxu0 0.0
    %149 = vmatpush1.msra.mxu0 0.0
    %150 = vmatprep.subr.mxu0 0.0
    %151 = vmatpush1.msra.mxu0 0.0
    %152 = vmatprep.subr.mxu0 0.0
    %153 = vmatpush1.msra.mxu0 0.0
    %154 = vmatprep.subr.mxu0 0.0
    %155 = vmatpush1.msra.mxu0 0.0
    %156 = vmatprep.subr.mxu0 0.0
    %157 = vmatpush1.msra.mxu0 0.0
    %158 = vmatprep.mubr.f32.mxu0 0.0
    %159 = vmatmul.mubr.f32.gmra.mrb[0].mxu0 %v69
    %v160 = vpop.f32.mrb[0].mxu0
    %v161 = vadd.f32 %v92, %v160
    %v162 = vpop.f32.mrb[0].mxu0
    %163 = vmatprep.mubr.f32.mxu0 0.0
    %164 = vmatmul.mubr.f32.gmra.mrb[0].mxu0 %v70
    %v165 = vpop.f32.mrb[0].mxu0
    %v166 = vadd.f32 %v92, %v165
    %v167 = vpop.f32.mrb[0].mxu0
    %168 = vdwg.mxu0
    %v169 = vmax.f32 %v161, 0.0
    %v170 = vmax.f32 %v166, 0.0
    %v171 = vld [vmem:[#allocation4] sm:$0xff]
    %v172 = vld [vmem:[#allocation4 + $0x8] sm:$0xff]
    %v173 = vld [vmem:[#allocation4 + $0x10] sm:$0xff]
    %v174 = vld [vmem:[#allocation4 + $0x18] sm:$0xff]
    %v175 = vld [vmem:[#allocation4 + $0x20] sm:$0xff]
    %v176 = vld [vmem:[#allocation4 + $0x28] sm:$0xff]
    %v177 = vld [vmem:[#allocation4 + $0x30] sm:$0xff]
    %v178 = vld [vmem:[#allocation4 + $0x38] sm:$0xff]
    %v179 = vld [vmem:[#allocation4 + $0x40] sm:$0xff]
    %v180 = vld [vmem:[#allocation4 + $0x48] sm:$0xff]
    %v181 = vld [vmem:[#allocation4 + $0x50] sm:$0xff]
    %v182 = vld [vmem:[#allocation4 + $0x58] sm:$0xff]
    %v183 = vld [vmem:[#allocation4 + $0x60] sm:$0xff]
    %v184 = vld [vmem:[#allocation4 + $0x68] sm:$0xff]
    %v185 = vld [vmem:[#allocation4 + $0x70] sm:$0xff]
    %v186 = vld [vmem:[#allocation4 + $0x78] sm:$0xff]
    %v187 = vld [vmem:[%s4] sm:$0x1]
    %v189 = vlaneseq
    %v190 = vshrl.u32 %v189, 7
    %v191 = vsub.s32 0, %v190
    %v192 = vrot.slane %v187, %v191
    %194 = vmatprep.subr.mxu0 0.0
    %195 = vmatpush1.msra.mxu0 %v171
    %196 = vmatprep.subr.mxu0 0.0
    %197 = vmatpush1.msra.mxu0 %v172
    %198 = vmatprep.subr.mxu0 0.0
    %199 = vmatpush1.msra.mxu0 %v173
    %200 = vmatprep.subr.mxu0 0.0
    %201 = vmatpush1.msra.mxu0 %v174
    %202 = vmatprep.subr.mxu0 0.0
    %203 = vmatpush1.msra.mxu0 %v175
    %204 = vmatprep.subr.mxu0 0.0
    %205 = vmatpush1.msra.mxu0 %v176
    %206 = vmatprep.subr.mxu0 0.0
    %207 = vmatpush1.msra.mxu0 %v177
    %208 = vmatprep.subr.mxu0 0.0
    %209 = vmatpush1.msra.mxu0 %v178
    %210 = vmatprep.subr.mxu0 0.0
    %211 = vmatpush1.msra.mxu0 %v179
    %212 = vmatprep.subr.mxu0 0.0
    %213 = vmatpush1.msra.mxu0 %v180
    %214 = vmatprep.subr.mxu0 0.0
    %215 = vmatpush1.msra.mxu0 %v181
    %216 = vmatprep.subr.mxu0 0.0
    %217 = vmatpush1.msra.mxu0 %v182
    %218 = vmatprep.subr.mxu0 0.0
    %219 = vmatpush1.msra.mxu0 %v183
    %220 = vmatprep.subr.mxu0 0.0
    %221 = vmatpush1.msra.mxu0 %v184
    %222 = vmatprep.subr.mxu0 0.0
    %223 = vmatpush1.msra.mxu0 %v185
    %224 = vmatprep.subr.mxu0 0.0
    %225 = vmatpush1.msra.mxu0 %v186
    %226 = vmatprep.subr.mxu0 0.0
    %227 = vmatpush1.msra.mxu0 0.0
    %228 = vmatprep.subr.mxu0 0.0
    %229 = vmatpush1.msra.mxu0 0.0
    %230 = vmatprep.subr.mxu0 0.0
    %231 = vmatpush1.msra.mxu0 0.0
    %232 = vmatprep.subr.mxu0 0.0
    %233 = vmatpush1.msra.mxu0 0.0
    %234 = vmatprep.subr.mxu0 0.0
    %235 = vmatpush1.msra.mxu0 0.0
    %236 = vmatprep.subr.mxu0 0.0
    %237 = vmatpush1.msra.mxu0 0.0
    %238 = vmatprep.subr.mxu0 0.0
    %239 = vmatpush1.msra.mxu0 0.0
    %240 = vmatprep.subr.mxu0 0.0
    %241 = vmatpush1.msra.mxu0 0.0
    %242 = vmatprep.subr.mxu0 0.0
    %243 = vmatpush1.msra.mxu0 0.0
    %244 = vmatprep.subr.mxu0 0.0
    %245 = vmatpush1.msra.mxu0 0.0
    %246 = vmatprep.subr.mxu0 0.0
    %247 = vmatpush1.msra.mxu0 0.0
    %248 = vmatprep.subr.mxu0 0.0
    %249 = vmatpush1.msra.mxu0 0.0
    %250 = vmatprep.subr.mxu0 0.0
    %251 = vmatpush1.msra.mxu0 0.0
    %252 = vmatprep.subr.mxu0 0.0
    %253 = vmatpush1.msra.mxu0 0.0
    %254 = vmatprep.subr.mxu0 0.0
    %255 = vmatpush1.msra.mxu0 0.0
    %256 = vmatprep.subr.mxu0 0.0
    %257 = vmatpush1.msra.mxu0 0.0
    %258 = vmatprep.mubr.f32.mxu0 0.0
    %259 = vmatmul.mubr.f32.gmra.mrb[0].mxu0 %v169
    %v260 = vpop.f32.mrb[0].mxu0
    %v261 = vadd.f32 %v192, %v260
    %v262 = vpop.f32.mrb[0].mxu0
    %263 = vmatprep.mubr.f32.mxu0 0.0
    %264 = vmatmul.mubr.f32.gmra.mrb[0].mxu0 %v170
    %v265 = vpop.f32.mrb[0].mxu0
    %v266 = vadd.f32 %v192, %v265
    %v267 = vpop.f32.mrb[0].mxu0
    %268 = vdwg.mxu0
    %v269 = vmax.f32 %v261, 0.0
    %v270 = vmax.f32 %v266, 0.0
    %v271 = vld [vmem:[#allocation6] sm:$0xff]
    %v272 = vld [vmem:[#allocation6 + $0x8] sm:$0xff]
    %v273 = vld [vmem:[#allocation6 + $0x10] sm:$0xff]
    %v274 = vld [vmem:[#allocation6 + $0x18] sm:$0xff]
    %v275 = vld [vmem:[#allocation6 + $0x20] sm:$0xff]
    %v276 = vld [vmem:[#allocation6 + $0x28] sm:$0xff]
    %v277 = vld [vmem:[#allocation6 + $0x30] sm:$0xff]
    %v278 = vld [vmem:[#allocation6 + $0x38] sm:$0xff]
    %v279 = vld [vmem:[#allocation6 + $0x40] sm:$0xff]
    %v280 = vld [vmem:[#allocation6 + $0x48] sm:$0xff]
    %v281 = vld [vmem:[#allocation6 + $0x50] sm:$0xff]
    %v282 = vld [vmem:[#allocation6 + $0x58] sm:$0xff]
    %v283 = vld [vmem:[#allocation6 + $0x60] sm:$0xff]
    %v284 = vld [vmem:[#allocation6 + $0x68] sm:$0xff]
    %v285 = vld [vmem:[#allocation6 + $0x70] sm:$0xff]
    %v286 = vld [vmem:[#allocation6 + $0x78] sm:$0xff]
    %v287 = vld [vmem:[%s6] sm:$0x1]
    %v289 = vlaneseq
    %v290 = vshrl.u32 %v289, 7
    %v291 = vsub.s32 0, %v290
    %v292 = vrot.slane %v287, %v291
    %294 = vmatprep.subr.mxu0 0.0
    %295 = vmatpush1.msra.mxu0 %v271
    %296 = vmatprep.subr.mxu0 0.0
    %297 = vmatpush1.msra.mxu0 %v272
    %298 = vmatprep.subr.mxu0 0.0
    %299 = vmatpush1.msra.mxu0 %v273
    %300 = vmatprep.subr.mxu0 0.0
    %301 = vmatpush1.msra.mxu0 %v274
    %302 = vmatprep.subr.mxu0 0.0
    %303 = vmatpush1.msra.mxu0 %v275
    %304 = vmatprep.subr.mxu0 0.0
    %305 = vmatpush1.msra.mxu0 %v276
    %306 = vmatprep.subr.mxu0 0.0
    %307 = vmatpush1.msra.mxu0 %v277
    %308 = vmatprep.subr.mxu0 0.0
    %309 = vmatpush1.msra.mxu0 %v278
    %310 = vmatprep.subr.mxu0 0.0
    %311 = vmatpush1.msra.mxu0 %v279
    %312 = vmatprep.subr.mxu0 0.0
    %313 = vmatpush1.msra.mxu0 %v280
    %314 = vmatprep.subr.mxu0 0.0
    %315 = vmatpush1.msra.mxu0 %v281
    %316 = vmatprep.subr.mxu0 0.0
    %317 = vmatpush1.msra.mxu0 %v282
    %318 = vmatprep.subr.mxu0 0.0
    %319 = vmatpush1.msra.mxu0 %v283
    %320 = vmatprep.subr.mxu0 0.0
    %321 = vmatpush1.msra.mxu0 %v284
    %322 = vmatprep.subr.mxu0 0.0
    %323 = vmatpush1.msra.mxu0 %v285
    %324 = vmatprep.subr.mxu0 0.0
    %325 = vmatpush1.msra.mxu0 %v286
    %326 = vmatprep.subr.mxu0 0.0
    %327 = vmatpush1.msra.mxu0 0.0
    %328 = vmatprep.subr.mxu0 0.0
    %329 = vmatpush1.msra.mxu0 0.0
    %330 = vmatprep.subr.mxu0 0.0
    %331 = vmatpush1.msra.mxu0 0.0
    %332 = vmatprep.subr.mxu0 0.0
    %333 = vmatpush1.msra.mxu0 0.0
    %334 = vmatprep.subr.mxu0 0.0
    %335 = vmatpush1.msra.mxu0 0.0
    %336 = vmatprep.subr.mxu0 0.0
    %337 = vmatpush1.msra.mxu0 0.0
    %338 = vmatprep.subr.mxu0 0.0
    %339 = vmatpush1.msra.mxu0 0.0
    %340 = vmatprep.subr.mxu0 0.0
    %341 = vmatpush1.msra.mxu0 0.0
    %342 = vmatprep.subr.mxu0 0.0
    %343 = vmatpush1.msra.mxu0 0.0
    %344 = vmatprep.subr.mxu0 0.0
    %345 = vmatpush1.msra.mxu0 0.0
    %346 = vmatprep.subr.mxu0 0.0
    %347 = vmatpush1.msra.mxu0 0.0
    %348 = vmatprep.subr.mxu0 0.0
    %349 = vmatpush1.msra.mxu0 0.0
    %350 = vmatprep.subr.mxu0 0.0
    %351 = vmatpush1.msra.mxu0 0.0
    %352 = vmatprep.subr.mxu0 0.0
    %353 = vmatpush1.msra.mxu0 0.0
    %354 = vmatprep.subr.mxu0 0.0
    %355 = vmatpush1.msra.mxu0 0.0
    %356 = vmatprep.subr.mxu0 0.0
    %357 = vmatpush1.msra.mxu0 0.0
    %358 = vmatprep.mubr.f32.mxu0 0.0
    %359 = vmatmul.mubr.f32.gmra.mrb[0].mxu0 %v269
    %v360 = vpop.f32.mrb[0].mxu0
    %v361 = vadd.f32 %v292, %v360
    %v362 = vpop.f32.mrb[0].mxu0
    %363 = vmatprep.mubr.f32.mxu0 0.0
    %364 = vmatmul.mubr.f32.gmra.mrb[0].mxu0 %v270
    %v365 = vpop.f32.mrb[0].mxu0
    %v366 = vadd.f32 %v292, %v365
    %v367 = vpop.f32.mrb[0].mxu0
    %368 = vdwg.mxu0
    %369 = vst [vmem:[%s7] sm:$0xff] %v361
    %370 = vst [vmem:[%s7 + $0x8] sm:$0xff] %v366
    %v371 = vmul.f32 %v361, 0.5
    %v372 = vmul.f32 %v366, 0.5
    %v373 = vmul.f32 %v371, 1.442695
    %v374 = vpow.pop %v373
    %v375 = vmul.f32 %v372, 1.442695
    %v376 = vpow.pop %v375
    %377 = vst [vmem:[%s8] sm:$0xff] %v374
    %378 = vst [vmem:[%s8 + $0x8] sm:$0xff] %v376
    // Predicated region
    $region42: #{encoder_forward.1} parent=1 // pred_check
      _
    $region43: #{encoder_forward.1} parent=1 // pred_check_branch
      %380 = sbr.rel (0) target = $region45
    $region44: #{encoder_forward.1} parent=1 // pred_region
      _
    $region45: #{encoder_forward.1} parent=1 // pred_fallthru
      _
    // Predicated region
    $region46: #{encoder_forward.1} parent=1 // pred_check
      _
    $region47: #{encoder_forward.1} parent=1 // pred_check_branch
      %382 = sbr.rel (0) target = $region49
    $region48: #{encoder_forward.1} parent=1 // pred_region
      _
    $region49: #{encoder_forward.1} parent=1 // pred_fallthru
      _
    // Predicated region
    $region50: #{encoder_forward.1} parent=1 // pred_check
      _
    $region51: #{encoder_forward.1} parent=1 // pred_check_branch
      %384 = sbr.rel (0) target = $region53
    $region52: #{encoder_forward.1} parent=1 // pred_region
      _
    $region53: #{encoder_forward.1} parent=1 // pred_fallthru
      _
    // Predicated region
    $region54: #{encoder_forward.1} parent=1 // pred_check
      _
    $region55: #{encoder_forward.1} parent=1 // pred_check_branch
      %386 = sbr.rel (0) target = $region57
    $region56: #{encoder_forward.1} parent=1 // pred_region
      _
    $region57: #{encoder_forward.1} parent=1 // pred_fallthru
      _
    %387 = vsyncpa [#allocation3], 1
    %388 = vsyncpa [#allocation5], 1

</llo_original>
